<compile_context>
chip_gen: v7x
topology: tpu7x:2x2x1
jax: 0.10.0
libtpu: 0.0.40
codegen_flags: <defaults>
</compile_context>

<pallas_src>
import functools

import jax
import jax.numpy as jnp
from jax.experimental import pallas as pl
from jax.experimental.pallas import tpu as pltpu


def _round_up(x, m):
    return (x + m - 1) // m * m


def _accumulate_and_finalize(sim, pos, valid_f, out_ref, m_sc, l_sc, ps_sc, pc_sc):
    """Shared online-LSE accumulation over the key-tile grid axis."""
    j = pl.program_id(1)

    @pl.when(j == 0)
    def _init():
        m_sc[...] = jnp.full_like(m_sc, -jnp.inf)
        l_sc[...] = jnp.zeros_like(l_sc)
        ps_sc[...] = jnp.zeros_like(ps_sc)
        pc_sc[...] = jnp.zeros_like(pc_sc)

    # Running max over raw logits (includes diagonal, like the reference).
    m_prev = m_sc[...]
    m_new = jnp.maximum(m_prev, jnp.max(sim, axis=1, keepdims=True))
    alpha = jnp.exp(m_prev - m_new)
    l_sc[...] = alpha * l_sc[...] + jnp.sum(
        jnp.exp(sim - m_new) * valid_f, axis=1, keepdims=True)
    m_sc[...] = m_new

    # Max-independent accumulators: sum(pos*logits) and sum(pos).
    ps_sc[...] = ps_sc[...] + jnp.sum(pos * sim, axis=1, keepdims=True)
    pc_sc[...] = pc_sc[...] + jnp.sum(pos, axis=1, keepdims=True)

    @pl.when(j == pl.num_programs(1) - 1)
    def _finalize():
        # mean_log_prob_pos = sum(pos*(logits - m))/sum(pos) - log(l)
        #                   = sum(pos*logits)/sum(pos) - m - log(l)
        out_ref[...] = ps_sc[...] / pc_sc[...] - m_sc[...] - jnp.log(l_sc[...])


def _tile_validity(tq, tk, actual_b):
    """valid[i,j] = (global_row != global_col) & (global_col < actual_b)."""
    rows = pl.program_id(0) * tq + jax.lax.broadcasted_iota(jnp.int32, (tq, tk), 0)
    cols = pl.program_id(1) * tk + jax.lax.broadcasted_iota(jnp.int32, (tq, tk), 1)
    return jnp.logical_and(rows != cols, cols < actual_b)


def _scores(q_ref, k_ref, inv_temp):
    """(q * 1/T) @ k.T via dot_general contracting D on both tiles."""
    q = q_ref[...] * jnp.asarray(inv_temp, dtype=q_ref.dtype)
    return jax.lax.dot_general(
        q, k_ref[...],
        dimension_numbers=(((1,), (1,)), ((), ())),
        preferred_element_type=jnp.float32)


def _supcon_labels_kernel(labq_ref, labk_ref, q_ref, k_ref, out_ref,
                          m_sc, l_sc, ps_sc, pc_sc, *, inv_temp, actual_b):
    tq, tk = q_ref.shape[0], k_ref.shape[0]
    sim = _scores(q_ref, k_ref, inv_temp)                      # (tq, tk) f32
    valid = _tile_validity(tq, tk, actual_b)
    valid_f = valid.astype(jnp.float32)
    # Positive mask computed in-kernel from labels (no BxB mask in HBM).
    pos = jnp.logical_and(labq_ref[...] == labk_ref[...], valid).astype(jnp.float32)
    _accumulate_and_finalize(sim, pos, valid_f, out_ref, m_sc, l_sc, ps_sc, pc_sc)


def _supcon_mask_kernel(mask_ref, q_ref, k_ref, out_ref,
                        m_sc, l_sc, ps_sc, pc_sc, *, inv_temp, actual_b):
    tq, tk = q_ref.shape[0], k_ref.shape[0]
    sim = _scores(q_ref, k_ref, inv_temp)
    valid = _tile_validity(tq, tk, actual_b)
    valid_f = valid.astype(jnp.float32)
    pos = mask_ref[...].astype(jnp.float32) * valid_f
    _accumulate_and_finalize(sim, pos, valid_f, out_ref, m_sc, l_sc, ps_sc, pc_sc)


def supcon_loss(features, labels=None, mask=None, temperature=0.07,
                block_q=256, block_k=512):
    """Pallas TPU implementation of SupConLoss.forward (flat [B, D] features)."""
    features = jnp.asarray(features)
    if features.ndim != 2:
        features = features.reshape(features.shape[0], -1)
    B, D = features.shape

    if labels is not None and mask is not None:
        raise ValueError("Cannot define both `labels` and `mask`")

    # ---- tile sizing (tiles must respect the (8,128) block constraints) ----
    b8 = _round_up(B, 8)
    tq = block_q if b8 > block_q else b8
    b_pad = _round_up(B, tq)
    if block_k <= b_pad and b_pad % block_k == 0:
        tk = block_k
    else:
        tk = tq
    d_pad = _round_up(D, 128)
    assert tq % 8 == 0 and b_pad % tq == 0 and b_pad % tk == 0
    assert tk % 128 == 0 or tk == b_pad

    # ---- pad operands; keep feature dtype (bf16 stays bf16 for the MXU) ----
    f_pad = jnp.pad(features, ((0, b_pad - B), (0, d_pad - D)))
    grid = (b_pad // tq, b_pad // tk)

    feat_q_spec = pl.BlockSpec((tq, d_pad), lambda i, j: (i, 0))
    feat_k_spec = pl.BlockSpec((tk, d_pad), lambda i, j: (j, 0))
    out_spec = pl.BlockSpec((tq, 1), lambda i, j: (i, 0))
    out_shape = jax.ShapeDtypeStruct((b_pad, 1), jnp.float32)
    scratch = [pltpu.VMEM((tq, 1), jnp.float32) for _ in range(4)]
    compiler_params = pltpu.CompilerParams(
        dimension_semantics=("parallel", "arbitrary"))

    inv_temp = 1.0 / float(temperature)

    if mask is None:
        # labels path (labels == None means identity mask == arange labels)
        if labels is None:
            lab = jnp.arange(B, dtype=jnp.int32)
        else:
            lab = jnp.asarray(labels).reshape(-1).astype(jnp.int32)
            if lab.shape[0] != B:
                raise ValueError("Num of labels does not match num of features")
        lab = jnp.pad(lab, (0, b_pad - B), constant_values=-1)
        lab_row = lab.reshape(b_pad, 1)
        lab_col = lab.reshape(1, b_pad)

        kernel = functools.partial(
            _supcon_labels_kernel, inv_temp=inv_temp, actual_b=B)
        in_specs = [
            pl.BlockSpec((tq, 1), lambda i, j: (i, 0)),   # row labels
            pl.BlockSpec((1, tk), lambda i, j: (0, j)),   # col labels
            feat_q_spec,
            feat_k_spec,
        ]
        args = (lab_row, lab_col, f_pad, f_pad)
    else:
        # explicit-mask path: stream BxB mask tiles (no way to avoid the BxB
        # input here since the caller provides it).
        m = jnp.asarray(mask).astype(jnp.float32)
        m = jnp.pad(m, ((0, b_pad - B), (0, b_pad - B)))
        kernel = functools.partial(
            _supcon_mask_kernel, inv_temp=inv_temp, actual_b=B)
        in_specs = [
            pl.BlockSpec((tq, tk), lambda i, j: (i, j)),
            feat_q_spec,
            feat_k_spec,
        ]
        args = (m, f_pad, f_pad)

    mlp = pl.pallas_call(
        kernel,
        out_shape=out_shape,
        grid_spec=pltpu.PrefetchScalarGridSpec(
            num_scalar_prefetch=0,
            grid=grid,
            in_specs=in_specs,
            out_specs=out_spec,
            scratch_shapes=scratch,
        ),
        compiler_params=compiler_params,
    )(*args)

    # Tiny epilogue in plain JAX: drop padded rows, negate, mean.
    return -jnp.mean(mlp[:B, 0])


def _reference_supcon(features, labels, temperature=0.07):
    """Pure-JAX reference mirroring the PyTorch module."""
    b = features.shape[0]
    labels = jnp.reshape(labels, (-1, 1))
    mask = (labels == labels.T).astype(jnp.float32)
    sim = (features.astype(jnp.float32) @ features.astype(jnp.float32).T) / temperature
    logits_mask = 1.0 - jnp.eye(b, dtype=jnp.float32)
    mask = mask * logits_mask
    logits_max = jnp.max(sim, axis=1, keepdims=True)
    logits = sim - logits_max
    exp_logits = jnp.exp(logits) * logits_mask
    log_prob = logits - jnp.log(jnp.sum(exp_logits, axis=1, keepdims=True))
    mean_log_prob_pos = jnp.sum(mask * log_prob, axis=1) / jnp.sum(mask, axis=1)
    return -jnp.mean(mean_log_prob_pos)


if __name__ == "__main__":
    key = jax.random.PRNGKey(0)
    k1, k2 = jax.random.split(key)

    # ---- small single-tile case ------------------------------------------
    B, D = 8, 32
    feats = jax.random.normal(k1, (B, D), dtype=jnp.float32)
    feats = feats / jnp.linalg.norm(feats, axis=1, keepdims=True)
    labels = jnp.array([0, 0, 1, 1, 2, 2, 3, 3], dtype=jnp.int32)

    loss = supcon_loss(feats, labels=labels, temperature=0.07)
    jax.block_until_ready(loss)
    ref = _reference_supcon(feats, labels, temperature=0.07)
    assert jnp.allclose(loss, ref, rtol=1e-4, atol=1e-4), (loss, ref)

    # explicit-mask path must agree with the labels path
    mask = (labels[:, None] == labels[None, :]).astype(jnp.float32)
    loss_m = supcon_loss(feats, mask=mask, temperature=0.07)
    jax.block_until_ready(loss_m)
    assert jnp.allclose(loss_m, ref, rtol=1e-4, atol=1e-4), (loss_m, ref)

    # ---- multi-tile case: exercises online LSE across key tiles, multiple
    #      query-row tiles, and batch/feature padding (272 -> 384, 48 -> 128).
    B2, D2 = 272, 48
    f2 = jax.random.normal(k2, (B2, D2), dtype=jnp.float32)
    f2 = f2 / jnp.linalg.norm(f2, axis=1, keepdims=True)
    l2 = jnp.arange(B2, dtype=jnp.int32) % 4
    loss2 = supcon_loss(f2, labels=l2, temperature=0.07, block_q=128, block_k=128)
    jax.block_until_ready(loss2)
    ref2 = _reference_supcon(f2, l2, temperature=0.07)
    assert jnp.allclose(loss2, ref2, rtol=1e-4, atol=1e-4), (loss2, ref2)

    print("KERNEL_OK")
</pallas_src>

<mosaic_0001>
module attributes {stable_mosaic.version = 11 : i64} {
  func.func @_supcon_labels_kernel(%arg0: i32, %arg1: i32, %arg2: memref<8x1xi32, #tpu.memory_space<vmem>>, %arg3: memref<1x8xi32, #tpu.memory_space<vmem>>, %arg4: memref<8x128xf32, #tpu.memory_space<vmem>>, %arg5: memref<8x128xf32, #tpu.memory_space<vmem>>, %arg6: memref<8x1xf32, #tpu.memory_space<vmem>>, %arg7: memref<8x1xf32, #tpu.memory_space<vmem>>, %arg8: memref<8x1xf32, #tpu.memory_space<vmem>>, %arg9: memref<8x1xf32, #tpu.memory_space<vmem>>, %arg10: memref<8x1xf32, #tpu.memory_space<vmem>>) attributes {dimension_semantics = [#tpu.dimension_semantics<parallel>, #tpu.dimension_semantics<arbitrary>], iteration_bounds = array<i64: 1, 1>, scalar_prefetch = 0 : i64, scratch_operands = 4 : i64, tpu.core_type = #tpu.core_type<tc>, window_params = [{transform_indices = @transform_0, window_bounds = array<i64: 8, 1>}, {transform_indices = @transform_1, window_bounds = array<i64: 1, 8>}, {transform_indices = @transform_2, window_bounds = array<i64: 8, 128>}, {transform_indices = @transform_3, window_bounds = array<i64: 8, 128>}, {transform_indices = @transform_4, window_bounds = array<i64: 8, 1>}]} {
    %c0 = arith.constant 0 : index
    %c0_0 = arith.constant 0 : index
    %0 = vector.load %arg4[%c0, %c0_0] : memref<8x128xf32, #tpu.memory_space<vmem>>, vector<8x128xf32>
    %cst = arith.constant 14.2857141 : f32
    %1 = vector.broadcast %cst : f32 to vector<8x128xf32>
    %2 = arith.mulf %0, %1 : vector<8x128xf32>
    %c0_1 = arith.constant 0 : index
    %c0_2 = arith.constant 0 : index
    %3 = vector.load %arg5[%c0_1, %c0_2] : memref<8x128xf32, #tpu.memory_space<vmem>>, vector<8x128xf32>
    %cst_3 = arith.constant dense<0.000000e+00> : vector<8x8xf32>
    %4 = tpu.matmul %2, %3, %cst_3 {dimension_numbers = #tpu.dot_dimension_numbers<[1], [1], [0], [0], [0, 0, 1, 0], [], []>} : vector<8x128xf32>, vector<8x128xf32>, vector<8x8xf32> -> vector<8x8xf32>
    %c8_i32 = arith.constant 8 : i32
    %5 = arith.muli %arg0, %c8_i32 : i32
    %6 = tpu.iota {dimensions = array<i32: 0>} : vector<8x8xi32>
    %7 = vector.broadcast %5 : i32 to vector<8x8xi32>
    %8 = arith.addi %7, %6 : vector<8x8xi32>
    %c8_i32_4 = arith.constant 8 : i32
    %9 = arith.muli %arg1, %c8_i32_4 : i32
    %10 = tpu.iota {dimensions = array<i32: 1>} : vector<8x8xi32>
    %11 = vector.broadcast %9 : i32 to vector<8x8xi32>
    %12 = arith.addi %11, %10 : vector<8x8xi32>
    %13 = arith.cmpi ne, %8, %12 : vector<8x8xi32>
    %c8_i32_5 = arith.constant 8 : i32
    %14 = vector.broadcast %c8_i32_5 : i32 to vector<8x8xi32>
    %15 = arith.cmpi slt, %12, %14 : vector<8x8xi32>
    %16 = arith.andi %13, %15 : vector<8x8xi1>
    %17 = arith.extui %16 : vector<8x8xi1> to vector<8x8xi32>
    %18 = arith.sitofp %17 : vector<8x8xi32> to vector<8x8xf32>
    %c0_6 = arith.constant 0 : index
    %c0_7 = arith.constant 0 : index
    %19 = vector.load %arg2[%c0_6, %c0_7] : memref<8x1xi32, #tpu.memory_space<vmem>>, vector<8x1xi32>
    %c0_8 = arith.constant 0 : index
    %c0_9 = arith.constant 0 : index
    %20 = vector.load %arg3[%c0_8, %c0_9] : memref<1x8xi32, #tpu.memory_space<vmem>>, vector<1x8xi32>
    %21 = vector.broadcast %19 : vector<8x1xi32> to vector<8x8xi32>
    %22 = vector.broadcast %20 : vector<1x8xi32> to vector<8x8xi32>
    %23 = arith.cmpi eq, %21, %22 : vector<8x8xi32>
    %24 = arith.andi %23, %16 : vector<8x8xi1>
    %25 = arith.extui %24 : vector<8x8xi1> to vector<8x8xi32>
    %26 = arith.sitofp %25 : vector<8x8xi32> to vector<8x8xf32>
    %c0_i32 = arith.constant 0 : i32
    %27 = arith.cmpi eq, %arg1, %c0_i32 : i32
    %28 = arith.extui %27 : i1 to i32
    %c0_i32_10 = arith.constant 0 : i32
    %29 = arith.cmpi ne, %28, %c0_i32_10 : i32
    scf.if %29 {
      %cst_33 = arith.constant 0xFF800000 : f32
      %61 = vector.broadcast %cst_33 : f32 to vector<8x1xf32>
      %c0_34 = arith.constant 0 : index
      %c0_35 = arith.constant 0 : index
      %62 = vector.load %arg7[%c0_34, %c0_35] : memref<8x1xf32, #tpu.memory_space<vmem>>, vector<8x1xf32>
      tpu.vector_store %arg7[%c0_34, %c0_35], %61 {strides = array<i32>} : memref<8x1xf32, #tpu.memory_space<vmem>>, vector<8x1xf32>,
      %cst_36 = arith.constant 0.000000e+00 : f32
      %63 = vector.broadcast %cst_36 : f32 to vector<8x1xf32>
      %c0_37 = arith.constant 0 : index
      %c0_38 = arith.constant 0 : index
      %64 = vector.load %arg8[%c0_37, %c0_38] : memref<8x1xf32, #tpu.memory_space<vmem>>, vector<8x1xf32>
      tpu.vector_store %arg8[%c0_37, %c0_38], %63 {strides = array<i32>} : memref<8x1xf32, #tpu.memory_space<vmem>>, vector<8x1xf32>,
      %cst_39 = arith.constant 0.000000e+00 : f32
      %65 = vector.broadcast %cst_39 : f32 to vector<8x1xf32>
      %c0_40 = arith.constant 0 : index
      %c0_41 = arith.constant 0 : index
      %66 = vector.load %arg9[%c0_40, %c0_41] : memref<8x1xf32, #tpu.memory_space<vmem>>, vector<8x1xf32>
      tpu.vector_store %arg9[%c0_40, %c0_41], %65 {strides = array<i32>} : memref<8x1xf32, #tpu.memory_space<vmem>>, vector<8x1xf32>,
      %cst_42 = arith.constant 0.000000e+00 : f32
      %67 = vector.broadcast %cst_42 : f32 to vector<8x1xf32>
      %c0_43 = arith.constant 0 : index
      %c0_44 = arith.constant 0 : index
      %68 = vector.load %arg10[%c0_43, %c0_44] : memref<8x1xf32, #tpu.memory_space<vmem>>, vector<8x1xf32>
      tpu.vector_store %arg10[%c0_43, %c0_44], %67 {strides = array<i32>} : memref<8x1xf32, #tpu.memory_space<vmem>>, vector<8x1xf32>,
    } else {
    }
    %c0_11 = arith.constant 0 : index
    %c0_12 = arith.constant 0 : index
    %30 = vector.load %arg7[%c0_11, %c0_12] : memref<8x1xf32, #tpu.memory_space<vmem>>, vector<8x1xf32>
    %cst_13 = arith.constant dense<0xFF800000> : vector<8xf32>
    %31 = vector.multi_reduction <maximumf>, %4, %cst_13 [1] : vector<8x8xf32> to vector<8xf32>
    %32 = vector.shape_cast %31 : vector<8xf32> to vector<8x1xf32>
    %33 = arith.maximumf %30, %32 : vector<8x1xf32>
    %34 = arith.subf %30, %33 : vector<8x1xf32>
    %35 = math.exp %34 : vector<8x1xf32>
    %c0_14 = arith.constant 0 : index
    %c0_15 = arith.constant 0 : index
    %36 = vector.load %arg8[%c0_14, %c0_15] : memref<8x1xf32, #tpu.memory_space<vmem>>, vector<8x1xf32>
    %37 = arith.mulf %35, %36 : vector<8x1xf32>
    %38 = vector.broadcast %33 : vector<8x1xf32> to vector<8x8xf32>
    %39 = arith.subf %4, %38 : vector<8x8xf32>
    %40 = math.exp %39 : vector<8x8xf32>
    %41 = arith.mulf %40, %18 : vector<8x8xf32>
    %cst_16 = arith.constant dense<0.000000e+00> : vector<8xf32>
    %42 = vector.multi_reduction <add>, %41, %cst_16 [1] : vector<8x8xf32> to vector<8xf32>
    %43 = vector.shape_cast %42 : vector<8xf32> to vector<8x1xf32>
    %44 = arith.addf %37, %43 : vector<8x1xf32>
    %c0_17 = arith.constant 0 : index
    %c0_18 = arith.constant 0 : index
    %45 = vector.load %arg8[%c0_17, %c0_18] : memref<8x1xf32, #tpu.memory_space<vmem>>, vector<8x1xf32>
    tpu.vector_store %arg8[%c0_17, %c0_18], %44 {strides = array<i32>} : memref<8x1xf32, #tpu.memory_space<vmem>>, vector<8x1xf32>,
    %c0_19 = arith.constant 0 : index
    %c0_20 = arith.constant 0 : index
    %46 = vector.load %arg7[%c0_19, %c0_20] : memref<8x1xf32, #tpu.memory_space<vmem>>, vector<8x1xf32>
    tpu.vector_store %arg7[%c0_19, %c0_20], %33 {strides = array<i32>} : memref<8x1xf32, #tpu.memory_space<vmem>>, vector<8x1xf32>,
    %c0_21 = arith.constant 0 : index
    %c0_22 = arith.constant 0 : index
    %47 = vector.load %arg9[%c0_21, %c0_22] : memref<8x1xf32, #tpu.memory_space<vmem>>, vector<8x1xf32>
    %48 = arith.mulf %26, %4 : vector<8x8xf32>
    %cst_23 = arith.constant dense<0.000000e+00> : vector<8xf32>
    %49 = vector.multi_reduction <add>, %48, %cst_23 [1] : vector<8x8xf32> to vector<8xf32>
    %50 = vector.shape_cast %49 : vector<8xf32> to vector<8x1xf32>
    %51 = arith.addf %47, %50 : vector<8x1xf32>
    %c0_24 = arith.constant 0 : index
    %c0_25 = arith.constant 0 : index
    %52 = vector.load %arg9[%c0_24, %c0_25] : memref<8x1xf32, #tpu.memory_space<vmem>>, vector<8x1xf32>
    tpu.vector_store %arg9[%c0_24, %c0_25], %51 {strides = array<i32>} : memref<8x1xf32, #tpu.memory_space<vmem>>, vector<8x1xf32>,
    %c0_26 = arith.constant 0 : index
    %c0_27 = arith.constant 0 : index
    %53 = vector.load %arg10[%c0_26, %c0_27] : memref<8x1xf32, #tpu.memory_space<vmem>>, vector<8x1xf32>
    %cst_28 = arith.constant dense<0.000000e+00> : vector<8xf32>
    %54 = vector.multi_reduction <add>, %26, %cst_28 [1] : vector<8x8xf32> to vector<8xf32>
    %55 = vector.shape_cast %54 : vector<8xf32> to vector<8x1xf32>
    %56 = arith.addf %53, %55 : vector<8x1xf32>
    %c0_29 = arith.constant 0 : index
    %c0_30 = arith.constant 0 : index
    %57 = vector.load %arg10[%c0_29, %c0_30] : memref<8x1xf32, #tpu.memory_space<vmem>>, vector<8x1xf32>
    tpu.vector_store %arg10[%c0_29, %c0_30], %56 {strides = array<i32>} : memref<8x1xf32, #tpu.memory_space<vmem>>, vector<8x1xf32>,
    %c0_i32_31 = arith.constant 0 : i32
    %58 = arith.cmpi eq, %arg1, %c0_i32_31 : i32
    %59 = arith.extui %58 : i1 to i32
    %c0_i32_32 = arith.constant 0 : i32
    %60 = arith.cmpi ne, %59, %c0_i32_32 : i32
    scf.if %60 {
      %c0_33 = arith.constant 0 : index
      %c0_34 = arith.constant 0 : index
      %61 = vector.load %arg9[%c0_33, %c0_34] : memref<8x1xf32, #tpu.memory_space<vmem>>, vector<8x1xf32>
      %c0_35 = arith.constant 0 : index
      %c0_36 = arith.constant 0 : index
      %62 = vector.load %arg10[%c0_35, %c0_36] : memref<8x1xf32, #tpu.memory_space<vmem>>, vector<8x1xf32>
      %63 = arith.divf %61, %62 : vector<8x1xf32>
      %c0_37 = arith.constant 0 : index
      %c0_38 = arith.constant 0 : index
      %64 = vector.load %arg7[%c0_37, %c0_38] : memref<8x1xf32, #tpu.memory_space<vmem>>, vector<8x1xf32>
      %65 = arith.subf %63, %64 : vector<8x1xf32>
      %c0_39 = arith.constant 0 : index
      %c0_40 = arith.constant 0 : index
      %66 = vector.load %arg8[%c0_39, %c0_40] : memref<8x1xf32, #tpu.memory_space<vmem>>, vector<8x1xf32>
      %67 = math.log %66 : vector<8x1xf32>
      %68 = arith.subf %65, %67 : vector<8x1xf32>
      %c0_41 = arith.constant 0 : index
      %c0_42 = arith.constant 0 : index
      %69 = vector.load %arg6[%c0_41, %c0_42] : memref<8x1xf32, #tpu.memory_space<vmem>>, vector<8x1xf32>
      tpu.vector_store %arg6[%c0_41, %c0_42], %68 {strides = array<i32>} : memref<8x1xf32, #tpu.memory_space<vmem>>, vector<8x1xf32>,
    } else {
    }
    return
  }
  func.func @transform_0(%arg0: i32, %arg1: i32) -> (i32, i32) {
    %c0_i32 = arith.constant 0 : i32
    %c0_i32_0 = arith.constant 0 : i32
    return %arg0, %c0_i32 : i32, i32
  }
  func.func @transform_1(%arg0: i32, %arg1: i32) -> (i32, i32) {
    %c0_i32 = arith.constant 0 : i32
    %c0_i32_0 = arith.constant 0 : i32
    return %c0_i32, %arg1 : i32, i32
  }
  func.func @transform_2(%arg0: i32, %arg1: i32) -> (i32, i32) {
    %c0_i32 = arith.constant 0 : i32
    %c0_i32_0 = arith.constant 0 : i32
    return %arg0, %c0_i32 : i32, i32
  }
  func.func @transform_3(%arg0: i32, %arg1: i32) -> (i32, i32) {
    %c0_i32 = arith.constant 0 : i32
    %c0_i32_0 = arith.constant 0 : i32
    return %arg1, %c0_i32 : i32, i32
  }
  func.func @transform_4(%arg0: i32, %arg1: i32) -> (i32, i32) {
    %c0_i32 = arith.constant 0 : i32
    %c0_i32_0 = arith.constant 0 : i32
    return %arg0, %c0_i32 : i32, i32
  }
}

</mosaic_0001>

<llo_original>
// kernel: tpu_custom_call.1
$region0: #{tpu_custom_call.1}
  #allocation0 [shape = 'u32[]', space=smem, size = 0x4, offset = 0x4, fixed_abs, tag = 'smem constant byte address 0x4 - core index']
  #allocation1 [shape = 'u32[144,128]{1,0:T(1,128)}', space=vmem, size = 0x12000, scoped, tag = 'internal scratch']
  #allocation2 [shape = 'f32[8,1]{1,0:T(8,128)}', space=vmem, size = 0x1000, scoped, tag = 'scratch operand']
  #allocation3 [shape = 'f32[8,1]{1,0:T(8,128)}', space=vmem, size = 0x1000, scoped, tag = 'scratch operand']
  #allocation4 [shape = 'f32[8,1]{1,0:T(8,128)}', space=vmem, size = 0x1000, scoped, tag = 'scratch operand']
  #allocation5 [shape = 'f32[8,1]{1,0:T(8,128)}', space=vmem, size = 0x1000, scoped, tag = 'scratch operand']
  %s0 = inlined_call_operand.vmem [shape: s32[8,1], index: 0, kind: input, shape index: {}]
  %s1 = inlined_call_operand.hbm [shape: s32[1,8], index: 1, kind: input, shape index: {}]
  %s2 = inlined_call_operand.vmem [shape: f32[8,128], index: 2, kind: input, shape index: {}]
  %s3 = inlined_call_operand.vmem [shape: f32[8,128], index: 3, kind: input, shape index: {}]
  %s4 = inlined_call_operand.vmem [shape: f32[8,1], index: 4, kind: output, shape index: {}]
  %s5 = sld [smem:[#allocation0]]
  $region38: #{tpu_custom_call.1} parent=0
    _
  %s7 = ssub.s32 1, %s5
  %s8 = scalar_select 0, %s7, %s5
  $region1: #{tpu_custom_call.1} parent=0
    #allocation6 [shape = 'u8[512]{0}', space=vmem, size = 0x400, scoped, tag = 'input window, operand 1, single buffered']
    #allocation7 [shape = 's32[1]{0}', space=sflag, size = 0x4, scoped, tag = 'scoped memory for tpu_custom_call.1']
    %9 = vsyncpa [#allocation7], 0
    // Predicated region
    $region2: #{tpu_custom_call.1} parent=1 // pred_check
      _
    $region3: #{tpu_custom_call.1} parent=1 // pred_check_branch
      %11 = sbr.rel (0) target = $region5
    $region4: #{tpu_custom_call.1} parent=1 // pred_region
      _
    $region5: #{tpu_custom_call.1} parent=1 // pred_fallthru
      _
    // Predicated region
    $region6: #{tpu_custom_call.1} parent=1 // pred_check
      _
    $region7: #{tpu_custom_call.1} parent=1 // pred_check_branch
      %13 = sbr.rel (0) target = $region9
    $region8: #{tpu_custom_call.1} parent=1 // pred_region
      %s15 = ssub.s32 16, 16
      %16 = vsyncadd [#allocation7], %s15
      %s18 = sshll.u32 [#allocation6], 4
      %s19 = int_to_ptr.vmem [resolvable:$true] %s18
      %21 = dma.hbm_to_vmem [thread:$0]  %s1, 16, %s19, [#allocation7]
    $region9: #{tpu_custom_call.1} parent=1 // pred_fallthru
      _
    // Predicated region
    $region10: #{tpu_custom_call.1} parent=1 // pred_check
      _
    $region11: #{tpu_custom_call.1} parent=1 // pred_check_branch
      %23 = sbr.rel (0) target = $region13
    $region12: #{tpu_custom_call.1} parent=1 // pred_region
      _
    $region13: #{tpu_custom_call.1} parent=1 // pred_fallthru
      _
    // Predicated region
    $region14: #{tpu_custom_call.1} parent=1 // pred_check
      _
    $region15: #{tpu_custom_call.1} parent=1 // pred_check_branch
      %25 = sbr.rel (0) target = $region17
    $region16: #{tpu_custom_call.1} parent=1 // pred_region
      _
    $region17: #{tpu_custom_call.1} parent=1 // pred_fallthru
      _
    // Predicated region
    $region18: #{tpu_custom_call.1} parent=1 // pred_check
      _
    $region19: #{tpu_custom_call.1} parent=1 // pred_check_branch
      %27 = sbr.rel (0) target = $region21
    $region20: #{tpu_custom_call.1} parent=1 // pred_region
      %28 = dma.done [#allocation7], 16
    $region21: #{tpu_custom_call.1} parent=1 // pred_fallthru
      _
    %v29 = vld [vmem:[%s2] sm:$0xff]
    %v30 = vmul.f32 %v29, 14.285714
    %v31 = vld [vmem:[%s3] sm:$0xff]
    %32 = vmatprep.subr.mxu0 0.0
    %33 = vmatpush1.xpose.msra.mxu0 %v31
    %34 = vmatprep.subr.mxu0 0.0
    %35 = vmatpush1.xpose.msra.mxu0 0.0
    %36 = vmatprep.subr.mxu0 0.0
    %37 = vmatpush1.xpose.msra.mxu0 0.0
    %38 = vmatprep.subr.mxu0 0.0
    %39 = vmatpush1.xpose.msra.mxu0 0.0
    %40 = vmatprep.subr.mxu0 0.0
    %41 = vmatpush1.xpose.msra.mxu0 0.0
    %42 = vmatprep.subr.mxu0 0.0
    %43 = vmatpush1.xpose.msra.mxu0 0.0
    %44 = vmatprep.subr.mxu0 0.0
    %45 = vmatpush1.xpose.msra.mxu0 0.0
    %46 = vmatprep.subr.mxu0 0.0
    %47 = vmatpush1.xpose.msra.mxu0 0.0
    %48 = vmatprep.subr.mxu0 0.0
    %49 = vmatpush1.xpose.msra.mxu0 0.0
    %50 = vmatprep.subr.mxu0 0.0
    %51 = vmatpush1.xpose.msra.mxu0 0.0
    %52 = vmatprep.subr.mxu0 0.0
    %53 = vmatpush1.xpose.msra.mxu0 0.0
    %54 = vmatprep.subr.mxu0 0.0
    %55 = vmatpush1.xpose.msra.mxu0 0.0
    %56 = vmatprep.subr.mxu0 0.0
    %57 = vmatpush1.xpose.msra.mxu0 0.0
    %58 = vmatprep.subr.mxu0 0.0
    %59 = vmatpush1.xpose.msra.mxu0 0.0
    %60 = vmatprep.subr.mxu0 0.0
    %61 = vmatpush1.xpose.msra.mxu0 0.0
    %62 = vmatprep.subr.mxu0 0.0
    %63 = vmatpush1.xpose.msra.mxu0 0.0
    %64 = vmatprep.subr.mxu0 0.0
    %65 = vmatpush1.xpose.msra.mxu0 0.0
    %66 = vmatprep.subr.mxu0 0.0
    %67 = vmatpush1.xpose.msra.mxu0 0.0
    %68 = vmatprep.subr.mxu0 0.0
    %69 = vmatpush1.xpose.msra.mxu0 0.0
    %70 = vmatprep.subr.mxu0 0.0
    %71 = vmatpush1.xpose.msra.mxu0 0.0
    %72 = vmatprep.subr.mxu0 0.0
    %73 = vmatpush1.xpose.msra.mxu0 0.0
    %74 = vmatprep.subr.mxu0 0.0
    %75 = vmatpush1.xpose.msra.mxu0 0.0
    %76 = vmatprep.subr.mxu0 0.0
    %77 = vmatpush1.xpose.msra.mxu0 0.0
    %78 = vmatprep.subr.mxu0 0.0
    %79 = vmatpush1.xpose.msra.mxu0 0.0
    %80 = vmatprep.subr.mxu0 0.0
    %81 = vmatpush1.xpose.msra.mxu0 0.0
    %82 = vmatprep.subr.mxu0 0.0
    %83 = vmatpush1.xpose.msra.mxu0 0.0
    %84 = vmatprep.subr.mxu0 0.0
    %85 = vmatpush1.xpose.msra.mxu0 0.0
    %86 = vmatprep.subr.mxu0 0.0
    %87 = vmatpush1.xpose.msra.mxu0 0.0
    %88 = vmatprep.subr.mxu0 0.0
    %89 = vmatpush1.xpose.msra.mxu0 0.0
    %90 = vmatprep.subr.mxu0 0.0
    %91 = vmatpush1.xpose.msra.mxu0 0.0
    %92 = vmatprep.subr.mxu0 0.0
    %93 = vmatpush1.xpose.msra.mxu0 0.0
    %94 = vmatprep.subr.mxu0 0.0
    %95 = vmatpush1.xpose.msra.mxu0 0.0
    %96 = vmatprep.mubr.f32.mxu0 0.0
    %97 = vmatmul.mubr.f32.gmra.mrb[0].mxu0 %v30
    %v98 = vpop.f32.mrb[0].mxu0
    %v99 = vadd.f32 0.0, %v98
    %v100 = vpop.f32.mrb[0].mxu0
    %101 = vdwg.mxu0
    %s102 = smul.u32 0, 8
    %v103 = vlaneseq
    %v104 = vshrl.u32 %v103, 7
    %v105 = vstv %s102
    %v106 = vadd.s32 %v105, %v104
    %s107 = smul.u32 0, 8
    %v108 = vlaneseq
    %v109 = vand.u32 %v108, 127
    %v110 = vstv %s107
    %v111 = vadd.s32 %v110, %v109
    %vm112 = vcmp.ne.s32.totalorder %v106, %v111
    %vm113 = vcmp.lt.s32.totalorder %v111, 8
    %vm114 = vmand %vm112, %vm113
    %v115 = vsel %vm114, 1, 0
    %v116 = vcvt.s32.f32 %v115
    %v117 = vld [vmem:[%s0] sm:$0xff]
    %v118 = vld [vmem:[#allocation6] sm:$0x1]
    %119 = vset.pattern.permute.xlu0 0
    %120 = vperm.xlu0 %119, %v117
    %v121 = vpop.permute.xlu0 %120
    %v122 = vlaneseq
    %v123 = vshrl.u32 %v122, 7
    %v124 = vsub.s32 0, %v123
    %v125 = vrot.slane %v118, %v124
    %vm126 = vcmp.eq.s32.totalorder %v121, %v125
    %vm127 = vmand %vm126, %vm114
    %v128 = vsel %vm127, 1, 0
    %v129 = vcvt.s32.f32 %v128
    %p130 = scmp.eq.s32.totalorder 0, 0
    // Predicated region
    $region22: #{tpu_custom_call.1} parent=1 // pred_check
      %p131 = pneg %p130
    $region23: #{tpu_custom_call.1} parent=1 // pred_check_branch
      %133 = sbr.rel (%p131) target = $region25
    $region24: #{tpu_custom_call.1} parent=1 // pred_region
      %vm134 = vcmask 7168
      %135 = vst.msk [vmem:[#allocation2] sm:$0xff] %vm134, -inf
      %136 = vst.msk [vmem:[#allocation3] sm:$0xff] %vm134, 0.0
      %137 = vst.msk [vmem:[#allocation4] sm:$0xff] %vm134, 0.0
      %138 = vst.msk [vmem:[#allocation5] sm:$0xff] %vm134, 0.0
    $region25: #{tpu_custom_call.1} parent=1 // pred_fallthru
      _
    %v139 = vld [vmem:[#allocation2] sm:$0xff]
    %vm140 = vcmask 64512
    %v141 = vsel %vm140, %v99, -inf
    %142 = vmax.xlane.f32.xlu0 %v141
    %v143 = vpop.xlane.xlu0 %142
    %v144 = vmax.f32 %v139, %v143
    %v145 = vsub.f32 %v139, %v144
    %v146 = vmul.f32 %v145, 1.442695
    %v147 = vpow.pop %v146
    %v148 = vld [vmem:[#allocation3] sm:$0xff]
    %v149 = vmul.f32 %v147, %v148
    %151 = vset.pattern.permute.xlu0 0
    %152 = vperm.xlu0 %151, %v144
    %v153 = vpop.permute.xlu0 %152
    %v155 = vsub.f32 %v99, %v153
    %v156 = vmul.f32 %v155, 1.442695
    %v157 = vpow.pop %v156
    %v158 = vmul.f32 %v157, %v116
    %v159 = vsel %vm140, %v158, 0.0
    %160 = vadd.xlane.f32.xlu0 %v159
    %v161 = vpop.xlane.xlu0 %160
    %v162 = vadd.f32 %v149, %v161
    %vm163 = vcmask 7168
    %164 = vst.msk [vmem:[#allocation3] sm:$0xff] %vm163, %v162
    %165 = vst.msk [vmem:[#allocation2] sm:$0xff] %vm163, %v144
    %v166 = vld [vmem:[#allocation4] sm:$0xff]
    %v167 = vmul.f32 %v129, %v99
    %v168 = vsel %vm140, %v167, 0.0
    %169 = vadd.xlane.f32.xlu0 %v168
    %v170 = vpop.xlane.xlu0 %169
    %v171 = vadd.f32 %v166, %v170
    %172 = vst.msk [vmem:[#allocation4] sm:$0xff] %vm163, %v171
    %v173 = vld [vmem:[#allocation5] sm:$0xff]
    %v174 = vsel %vm140, %v129, 0.0
    %175 = vadd.xlane.f32.xlu0 %v174
    %v176 = vpop.xlane.xlu0 %175
    %v177 = vadd.f32 %v173, %v176
    %178 = vst.msk [vmem:[#allocation5] sm:$0xff] %vm163, %v177
    // Predicated region
    $region26: #{tpu_custom_call.1} parent=1 // pred_check
      %p179 = pneg %p130
    $region27: #{tpu_custom_call.1} parent=1 // pred_check_branch
      %181 = sbr.rel (%p179) target = $region29
    $region28: #{tpu_custom_call.1} parent=1 // pred_region
      %v182 = vld [vmem:[#allocation4] sm:$0xff]
      %v183 = vld [vmem:[#allocation5] sm:$0xff]
      %v184 = vrcp.pop %v183
      %v185 = vmul.f32 %v182, %v184
      %v186 = vld [vmem:[#allocation2] sm:$0xff]
      %v187 = vsub.f32 %v185, %v186
      %v188 = vld [vmem:[#allocation3] sm:$0xff]
      %v189 = vlog2.pop %v188
      %v190 = vmul.f32 %v189, 0.6931472
      %v191 = vsub.f32 %v187, %v190
      %192 = vst.msk [vmem:[%s4] sm:$0xff] %vm163, %v191
    $region29: #{tpu_custom_call.1} parent=1 // pred_fallthru
      _
    // Predicated region
    $region30: #{tpu_custom_call.1} parent=1 // pred_check
      _
    $region31: #{tpu_custom_call.1} parent=1 // pred_check_branch
      %194 = sbr.rel (0) target = $region33
    $region32: #{tpu_custom_call.1} parent=1 // pred_region
      _
    $region33: #{tpu_custom_call.1} parent=1 // pred_fallthru
      _
    // Predicated region
    $region34: #{tpu_custom_call.1} parent=1 // pred_check
      _
    $region35: #{tpu_custom_call.1} parent=1 // pred_check_branch
      %196 = sbr.rel (0) target = $region37
    $region36: #{tpu_custom_call.1} parent=1 // pred_region
      _
    $region37: #{tpu_custom_call.1} parent=1 // pred_fallthru
      _
    %197 = vsyncpa [#allocation7], 1

</llo_original>
